<compile_context>
chip_gen: v7x
topology: tpu7x:2x2x1
jax: 0.10.0
libtpu: 0.0.40
codegen_flags: <defaults>
</compile_context>

<pallas_src>
import functools

import jax
import jax.numpy as jnp
from jax.experimental import pallas as pl
from jax.experimental.pallas import tpu as pltpu

_LANE = 128
_MIN_TILE_N = 512      # amortize ~0.35 us/grid-step overhead
_MAX_TILE_N = 4096     # keep >= 2 blocks for moderate N; VMEM is a non-issue here
_PALLAS_MIN_N = 1024   # below this, a fused XLA expression beats the kernel


def _round_up(x, m):
    return (x + m - 1) // m * m


def _choose_tile_n(n):
    """Lane-tile size: multiple of 128, in [512, 4096], >= 2 grid blocks when possible."""
    half = _round_up(pl.cdiv(n, 2), _LANE)
    return max(_MIN_TILE_N, min(half, _MAX_TILE_N))


def _zero_cost_kernel(vels_ref, goal_ref, out_ref, *, max_vel, hinge_val, weight):
    # vels_ref: (D, tile_n), goal_ref: (1, tile_n), out_ref: (1, tile_n)
    v = vels_ref[...]
    sq = v * v  # squared velocities; masked-out entries drop out of the sum

    if max_vel > 0.0:
        # |v| < max_vel  <=>  v*v < max_vel**2  (max_vel > 0)
        sq = jnp.where(sq >= (max_vel * max_vel), sq, jnp.zeros_like(sq))

    total = jnp.sum(sq, axis=0, keepdims=True)  # sublane (XLU) reduce -> (1, tile_n)

    if hinge_val > 0.0:
        # torch: where(goal <= hinge, vel_err, 0*vel_err/goal). The else-branch is
        # selected only when goal > hinge_val > 0, so it is exactly 0 (no divide).
        # Mask applied AFTER the reduce: one select on a 7x smaller row.
        total = jnp.where(goal_ref[...] <= hinge_val, total, jnp.zeros_like(total))

    out_ref[...] = (weight * total).astype(out_ref.dtype)


def zero_cost_transposed(v_dn, goal_row, *, hinge_val=100.0, weight=1.0, max_vel=0.001):
    """Preferred (producer-layout) entry: v_dn (D, N) f32, goal_row (1, N) f32 -> (1, N) cost.

    If the MPC rollout stores velocities as (D, B*H) and goal distances as (1, B*H),
    no transpose/copy is needed before the kernel.
    """
    D, N = v_dn.shape
    assert goal_row.shape == (1, N)

    tile_n = _choose_tile_n(N)
    grid_n = pl.cdiv(N, tile_n)  # ragged last block; tail lanes are discarded by the
    # masked partial write (each lane is independent: the reduce is over sublanes only).

    kernel = functools.partial(
        _zero_cost_kernel,
        max_vel=float(max_vel),
        hinge_val=float(hinge_val),
        weight=float(weight),
    )

    return pl.pallas_call(
        kernel,
        out_shape=jax.ShapeDtypeStruct((1, N), v_dn.dtype),
        grid_spec=pltpu.PrefetchScalarGridSpec(
            num_scalar_prefetch=0,
            grid=(grid_n,),
            in_specs=[
                pl.BlockSpec((D, tile_n), lambda i: (0, i)),
                pl.BlockSpec((1, tile_n), lambda i: (0, i)),
            ],
            out_specs=pl.BlockSpec((1, tile_n), lambda i: (0, i)),
        ),
        compiler_params=pltpu.CompilerParams(
            dimension_semantics=("parallel",),
        ),
    )(v_dn, goal_row)


def _zero_cost_xla(vels, goal, *, hinge_val, weight, max_vel):
    """Fused XLA path for tiny N (same divide-free simplification)."""
    sq = vels * vels
    if max_vel > 0.0:
        sq = jnp.where(sq >= (max_vel * max_vel), sq, 0.0)
    total = jnp.sum(sq, axis=-1)
    if hinge_val > 0.0:
        total = jnp.where(goal <= hinge_val, total, 0.0)
    return weight * total


def zero_cost(vels, goal_dist, *, hinge_val=100.0, weight=1.0, max_vel=0.001):
    """vels: (B, H, D) f32, goal_dist: (B, H, 1) or (B, H) f32 -> cost (B, H) f32."""
    B, H, D = vels.shape
    goal = goal_dist.reshape(B, H) if goal_dist.ndim == 3 else goal_dist
    assert goal.shape == (B, H)
    N = B * H

    if N < _PALLAS_MIN_N:
        # Launch + layout plumbing dominate at tiny N; use the fused XLA expression.
        return _zero_cost_xla(vels, goal,
                              hinge_val=float(hinge_val),
                              weight=float(weight),
                              max_vel=float(max_vel))

    # Layout plumbing: big B*H axis on lanes, small DOF axis on sublanes.
    # TODO(synk): have the MPC rollout emit velocities already in (D, B*H) layout
    # and call zero_cost_transposed() directly, removing this transpose copy.
    v_dn = jnp.transpose(vels.reshape(N, D))   # (D, N), no pad
    g_row = goal.reshape(1, N)                 # (1, N), no pad

    out = zero_cost_transposed(v_dn, g_row,
                               hinge_val=hinge_val, weight=weight, max_vel=max_vel)
    return out.reshape(B, H)


def zero_cost_ref(vels, goal_dist, *, hinge_val=100.0, weight=1.0, max_vel=0.001):
    """Literal translation of the torch forward (identity GaussianProjection)."""
    vel_err = jnp.abs(vels)
    vel_err = jnp.where(vel_err < max_vel, 0.0, vel_err)
    if hinge_val > 0.0:
        vel_err = jnp.where(goal_dist <= hinge_val, vel_err, 0.0 * vel_err / goal_dist)
    return weight * jnp.sum(jnp.square(vel_err), axis=-1)


if __name__ == "__main__":
    key = jax.random.PRNGKey(0)
    k1, k2 = jax.random.split(key)

    # Moderate shapes so the Pallas path (grid of 2 blocks) is exercised.
    B, H, D = 4, 256, 7  # batch, horizon, dof -> N = 1024
    vels = jax.random.normal(k1, (B, H, D), dtype=jnp.float32) * 0.5
    # goal distances: mix of small (<= hinge) and large (> hinge) values
    goal_dist = jnp.abs(jax.random.normal(k2, (B, H, 1), dtype=jnp.float32)) * 120.0

    cost = zero_cost(vels, goal_dist, hinge_val=100.0, weight=1.0, max_vel=0.001)
    cost = jax.block_until_ready(cost)
    ref = zero_cost_ref(vels, goal_dist, hinge_val=100.0, weight=1.0, max_vel=0.001)
    assert cost.shape == (B, H)
    assert jnp.allclose(cost, ref, atol=1e-5, rtol=1e-5), (cost, ref)

    # Tiny-N fallback path (B=2, H=8, as in the original demo).
    k3, k4 = jax.random.split(jax.random.PRNGKey(1))
    vels_s = jax.random.normal(k3, (2, 8, D), dtype=jnp.float32) * 0.5
    goal_s = jnp.abs(jax.random.normal(k4, (2, 8, 1), dtype=jnp.float32)) * 120.0
    cost_s = jax.block_until_ready(zero_cost(vels_s, goal_s))
    ref_s = zero_cost_ref(vels_s, goal_s)
    assert jnp.allclose(cost_s, ref_s, atol=1e-5, rtol=1e-5), (cost_s, ref_s)

    print("KERNEL_OK")
</pallas_src>

<mosaic_0001>
module attributes {stable_mosaic.version = 11 : i64} {
  func.func @_zero_cost_kernel(%arg0: i32, %arg1: memref<7x512xf32, #tpu.memory_space<vmem>>, %arg2: memref<1x512xf32, #tpu.memory_space<vmem>>, %arg3: memref<1x512xf32, #tpu.memory_space<vmem>>) attributes {dimension_semantics = [#tpu.dimension_semantics<parallel>], iteration_bounds = array<i64: 2>, scalar_prefetch = 0 : i64, scratch_operands = 0 : i64, tpu.core_type = #tpu.core_type<tc>, window_params = [{transform_indices = @transform_0, window_bounds = array<i64: 7, 512>}, {transform_indices = @transform_1, window_bounds = array<i64: 1, 512>}, {transform_indices = @transform_2, window_bounds = array<i64: 1, 512>}]} {
    %c0 = arith.constant 0 : index
    %c0_0 = arith.constant 0 : index
    %0 = vector.load %arg1[%c0, %c0_0] : memref<7x512xf32, #tpu.memory_space<vmem>>, vector<7x512xf32>
    %1 = arith.mulf %0, %0 : vector<7x512xf32>
    %cst = arith.constant 9.99999997E-7 : f32
    %2 = vector.broadcast %cst : f32 to vector<7x512xf32>
    %3 = arith.cmpf oge, %1, %2 : vector<7x512xf32>
    %cst_1 = arith.constant 0.000000e+00 : f32
    %4 = vector.broadcast %cst_1 : f32 to vector<7x512xf32>
    %5 = arith.select %3, %1, %4 : vector<7x512xi1>, vector<7x512xf32>
    %cst_2 = arith.constant dense<0.000000e+00> : vector<512xf32>
    %6 = vector.multi_reduction <add>, %5, %cst_2 [0] : vector<7x512xf32> to vector<512xf32>
    %7 = vector.shape_cast %6 : vector<512xf32> to vector<1x512xf32>
    %c0_3 = arith.constant 0 : index
    %c0_4 = arith.constant 0 : index
    %8 = vector.load %arg2[%c0_3, %c0_4] : memref<1x512xf32, #tpu.memory_space<vmem>>, vector<1x512xf32>
    %cst_5 = arith.constant 1.000000e+02 : f32
    %9 = vector.broadcast %cst_5 : f32 to vector<1x512xf32>
    %10 = arith.cmpf ole, %8, %9 : vector<1x512xf32>
    %cst_6 = arith.constant 0.000000e+00 : f32
    %11 = vector.broadcast %cst_6 : f32 to vector<1x512xf32>
    %12 = arith.select %10, %7, %11 : vector<1x512xi1>, vector<1x512xf32>
    %cst_7 = arith.constant 1.000000e+00 : f32
    %13 = vector.broadcast %cst_7 : f32 to vector<1x512xf32>
    %14 = arith.mulf %13, %12 : vector<1x512xf32>
    %c0_8 = arith.constant 0 : index
    %c0_9 = arith.constant 0 : index
    %15 = vector.load %arg3[%c0_8, %c0_9] : memref<1x512xf32, #tpu.memory_space<vmem>>, vector<1x512xf32>
    tpu.vector_store %arg3[%c0_8, %c0_9], %14 {strides = array<i32>} : memref<1x512xf32, #tpu.memory_space<vmem>>, vector<1x512xf32>,
    return
  }
  func.func @transform_0(%arg0: i32) -> (i32, i32) {
    %c0_i32 = arith.constant 0 : i32
    %c0_i32_0 = arith.constant 0 : i32
    return %c0_i32, %arg0 : i32, i32
  }
  func.func @transform_1(%arg0: i32) -> (i32, i32) {
    %c0_i32 = arith.constant 0 : i32
    %c0_i32_0 = arith.constant 0 : i32
    return %c0_i32, %arg0 : i32, i32
  }
  func.func @transform_2(%arg0: i32) -> (i32, i32) {
    %c0_i32 = arith.constant 0 : i32
    %c0_i32_0 = arith.constant 0 : i32
    return %c0_i32, %arg0 : i32, i32
  }
}

</mosaic_0001>

<llo_original>
// kernel: tpu_custom_call.1
$region0: #{tpu_custom_call.1}
  #allocation0 [shape = 'u32[]', space=smem, size = 0x4, offset = 0x4, fixed_abs, tag = 'smem constant byte address 0x4 - core index']
  #allocation1 [shape = 'u32[144,128]{1,0:T(1,128)}', space=vmem, size = 0x12000, scoped, tag = 'internal scratch']
  %s0 = inlined_call_operand.hbm [shape: f32[7,1024], index: 0, kind: input, shape index: {}]
  %s1 = inlined_call_operand.hbm [shape: f32[1,1024], index: 1, kind: input, shape index: {}]
  %s2 = inlined_call_operand.hbm [shape: f32[1,1024], index: 2, kind: output, shape index: {}]
  %s3 = sld [smem:[#allocation0]]
  $region49: #{tpu_custom_call.1} parent=0
    _
  %s5 = ssub.s32 1, %s3
  %s6 = scalar_select 0, %s5, %s3
  $region1: #{tpu_custom_call.1} parent=0
    #allocation2 [shape = 'u8[32768]{0}', space=vmem, size = 0x8000, scoped, tag = 'input window, operand 0']
    #allocation3 [shape = 's32[2]{0}', space=sflag, size = 0x8, scoped, tag = 'scoped memory for tpu_custom_call.1']
    #allocation4 [shape = 's32[2]{0}', space=sflag, size = 0x8, scoped, tag = 'scoped memory for tpu_custom_call.1']
    #allocation5 [shape = 'u8[4096]{0}', space=vmem, size = 0x1000, scoped, tag = 'input window, operand 1']
    #allocation6 [shape = 's32[2]{0}', space=sflag, size = 0x8, scoped, tag = 'scoped memory for tpu_custom_call.1']
    #allocation7 [shape = 'u8[4096]{0}', space=vmem, size = 0x1000, scoped, tag = 'output window, operand 0']
    %7 = vsyncpa [#allocation3], 0
    %s8 = scalar_lea.sflag [#allocation3], 1
    %9 = vsyncpa %s8, 0
    %10 = vsyncpa [#allocation6], 0
    %s11 = scalar_lea.sflag [#allocation6], 1
    %12 = vsyncpa %s11, 0
    %13 = vsyncpa [#allocation4], 0
    %s14 = scalar_lea.sflag [#allocation4], 1
    %15 = vsyncpa %s14, 0
    loop: start=0, step=1, limit=4
    $region2: #{tpu_custom_call.1} parent=1 // loop_pre_header
      _
    $region3: #{tpu_custom_call.1} parent=1 // loop_header
      %s17 = sphi 0, %s21
      %p18 = scmp.ge.s32.totalorder %s17, 4
      %s27 = sphi 0, %s29
      %s30 = sphi 0, %s27
      %s31 = sphi 0, %s30
      %s47 = sphi 0, %s31
      %s53 = sphi 0, %s55
      %s56 = sphi 0, %s53
      %s57 = sphi 0, %s56
      %s73 = sphi 0, %s57
      %s79 = sphi 0, %s81
      %s82 = sphi 0, %s79
      %s83 = sphi 0, %s82
      %s99 = sphi 0, %s83
    $region4: #{tpu_custom_call.1} parent=1 // loop_header_branch
      %20 = sbr.rel (%p18) target = $region8
    $region5: #{tpu_custom_call.1} parent=1 // loop_body
      %s22 = ssub.s32 %s17, 1
      %s23 = ssub.s32 %s17, 2
      %s24 = sadd.s32 %s17, 1
      %s25 = ssub.s32 %s17, %s24
      %p26 = scmp.eq.s32.totalorder %s25, 0
      %s28 = sadd.s32 %s27, 1
      %s29 = scalar_select %p26, %s27, %s28
      %p32 = pneg %p26
      %p33 = scmp.eq.s32.totalorder %s17, 1
      %p34 = por %p32, %p33
      %p35 = scmp.ne.s32.totalorder %s27, %s30
      %p36 = scmp.eq.s32.totalorder %s17, 0
      %p37 = por %p35, %p36
      %p38 = scmp.ne.s32.totalorder %s27, %s30
      %p39 = scmp.eq.s32.totalorder %s22, 1
      %p40 = por %p38, %p39
      %p41 = scmp.ne.s32.totalorder %s30, %s31
      %p42 = scmp.eq.s32.totalorder %s22, 0
      %p43 = por %p41, %p42
      %p44 = scmp.ne.s32.totalorder %s30, %s31
      %p45 = scmp.eq.s32.totalorder %s23, 1
      %p46 = por %p44, %p45
      %p48 = scmp.ne.s32.totalorder %s31, %s47
      %p49 = scmp.eq.s32.totalorder %s23, 0
      %p50 = por %p48, %p49
      %s51 = ssub.s32 %s17, %s24
      %p52 = scmp.eq.s32.totalorder %s51, 0
      %s54 = sadd.s32 %s53, 1
      %s55 = scalar_select %p52, %s53, %s54
      %p58 = pneg %p52
      %p59 = scmp.eq.s32.totalorder %s17, 1
      %p60 = por %p58, %p59
      %p61 = scmp.ne.s32.totalorder %s53, %s56
      %p62 = scmp.eq.s32.totalorder %s17, 0
      %p63 = por %p61, %p62
      %p64 = scmp.ne.s32.totalorder %s53, %s56
      %p65 = scmp.eq.s32.totalorder %s22, 1
      %p66 = por %p64, %p65
      %p67 = scmp.ne.s32.totalorder %s56, %s57
      %p68 = scmp.eq.s32.totalorder %s22, 0
      %p69 = por %p67, %p68
      %p70 = scmp.ne.s32.totalorder %s56, %s57
      %p71 = scmp.eq.s32.totalorder %s23, 1
      %p72 = por %p70, %p71
      %p74 = scmp.ne.s32.totalorder %s57, %s73
      %p75 = scmp.eq.s32.totalorder %s23, 0
      %p76 = por %p74, %p75
      %s77 = ssub.s32 %s17, %s24
      %p78 = scmp.eq.s32.totalorder %s77, 0
      %s80 = sadd.s32 %s79, 1
      %s81 = scalar_select %p78, %s79, %s80
      %p84 = pneg %p78
      %p85 = scmp.eq.s32.totalorder %s17, 1
      %p86 = por %p84, %p85
      %p87 = scmp.ne.s32.totalorder %s79, %s82
      %p88 = scmp.eq.s32.totalorder %s17, 0
      %p89 = por %p87, %p88
      %p90 = scmp.ne.s32.totalorder %s79, %s82
      %p91 = scmp.eq.s32.totalorder %s22, 1
      %p92 = por %p90, %p91
      %p93 = scmp.ne.s32.totalorder %s82, %s83
      %p94 = scmp.eq.s32.totalorder %s22, 0
      %p95 = por %p93, %p94
      %p96 = scmp.ne.s32.totalorder %s82, %s83
      %p97 = scmp.eq.s32.totalorder %s23, 1
      %p98 = por %p96, %p97
      %p100 = scmp.ne.s32.totalorder %s83, %s99
      %p101 = scmp.eq.s32.totalorder %s23, 0
      %p102 = por %p100, %p101
      %p103 = scmp.le.s32.totalorder 1, %s17
      %p104 = scmp.lt.s32.totalorder %s17, 3
      %p105 = pnand %p103, %p104
      %p106 = pneg %p105
      // Predicated region
      $region9: #{tpu_custom_call.1} parent=5 // pred_check
        _
      $region10: #{tpu_custom_call.1} parent=5 // pred_check_branch
        %108 = sbr.rel (%p105) target = $region12
      $region11: #{tpu_custom_call.1} parent=5 // pred_region
        %s109 = ssub.s32 %s17, 1
      $region12: #{tpu_custom_call.1} parent=5 // pred_fallthru
        _
      %p110 = scmp.lt.s32.totalorder %s17, 2
      // Predicated region
      $region13: #{tpu_custom_call.1} parent=5 // pred_check
        %p111 = pneg %p110
      $region14: #{tpu_custom_call.1} parent=5 // pred_check_branch
        %113 = sbr.rel (%p111) target = $region16
      $region15: #{tpu_custom_call.1} parent=5 // pred_region
        // Predicated region
        $region17: #{tpu_custom_call.1} parent=15 // pred_check
          %p114 = pneg %p37
        $region18: #{tpu_custom_call.1} parent=15 // pred_check_branch
          %116 = sbr.rel (%p114) target = $region20
        $region19: #{tpu_custom_call.1} parent=15 // pred_region
          %s117 = sand.u32 %s27, 1
          %s118 = scalar_lea.sflag [#allocation3], %s117
          %s119 = sand.u32 %s27, 1
          %s120 = smul.addr %s119, 32
          %s121 = scalar_lea.vmem [#allocation2], %s120
          %s122 = smul.u32 4, %s17
          %s124 = ssub.s32 512, 512
          %125 = vsyncadd %s118, %s124
          %s126 = smul.addr %s122, 128
          %s127 = scalar_lea.hbm %s0, %s126
          %s129 = sshll.u32 %s121, 4
          %s130 = int_to_ptr.vmem [resolvable:$true] %s129
          %132 = dma.hbm_to_vmem [thread:$0]  %s127, 512, %s130, %s118
        $region20: #{tpu_custom_call.1} parent=15 // pred_fallthru
          _
        // Predicated region
        $region21: #{tpu_custom_call.1} parent=15 // pred_check
          %p133 = pneg %p63
        $region22: #{tpu_custom_call.1} parent=15 // pred_check_branch
          %135 = sbr.rel (%p133) target = $region24
        $region23: #{tpu_custom_call.1} parent=15 // pred_region
          %s136 = sand.u32 %s53, 1
          %s137 = scalar_lea.sflag [#allocation6], %s136
          %s138 = sand.u32 %s53, 1
          %s139 = smul.addr %s138, 4
          %s140 = scalar_lea.vmem [#allocation5], %s139
          %s141 = smul.u32 4, %s17
          %s143 = ssub.s32 64, 64
          %144 = vsyncadd %s137, %s143
          %s145 = smul.addr %s141, 16
          %s146 = scalar_lea.hbm %s1, %s145
          %s148 = sshll.u32 %s140, 4
          %s149 = int_to_ptr.vmem [resolvable:$true] %s148
          %151 = dma.hbm_to_vmem [thread:$0]  %s146, 64, %s149, %s137
        $region24: #{tpu_custom_call.1} parent=15 // pred_fallthru
          _
      $region16: #{tpu_custom_call.1} parent=5 // pred_fallthru
        _
      %p152 = scmp.le.s32.totalorder 1, %s17
      %p153 = scmp.lt.s32.totalorder %s17, 3
      %p154 = pnand %p152, %p153
      %p155 = pneg %p154
      // Predicated region
      $region25: #{tpu_custom_call.1} parent=5 // pred_check
        _
      $region26: #{tpu_custom_call.1} parent=5 // pred_check_branch
        %157 = sbr.rel (%p154) target = $region28
      $region27: #{tpu_custom_call.1} parent=5 // pred_region
        %s158 = ssub.s32 %s17, 1
        %s159 = sand.u32 %s30, 1
        %s160 = scalar_lea.sflag [#allocation3], %s159
        %s161 = sand.u32 %s30, 1
        %s162 = smul.addr %s161, 32
        %s163 = scalar_lea.vmem [#allocation2], %s162
        // Predicated region
        $region29: #{tpu_custom_call.1} parent=27 // pred_check
          %p164 = pneg %p43
        $region30: #{tpu_custom_call.1} parent=27 // pred_check_branch
          %166 = sbr.rel (%p164) target = $region32
        $region31: #{tpu_custom_call.1} parent=27 // pred_region
          %167 = dma.done %s160, 512
        $region32: #{tpu_custom_call.1} parent=27 // pred_fallthru
          _
        %s168 = sand.u32 %s56, 1
        %s169 = scalar_lea.sflag [#allocation6], %s168
        %s170 = sand.u32 %s56, 1
        %s171 = smul.addr %s170, 4
        %s172 = scalar_lea.vmem [#allocation5], %s171
        // Predicated region
        $region33: #{tpu_custom_call.1} parent=27 // pred_check
          %p173 = pneg %p69
        $region34: #{tpu_custom_call.1} parent=27 // pred_check_branch
          %175 = sbr.rel (%p173) target = $region36
        $region35: #{tpu_custom_call.1} parent=27 // pred_region
          %176 = dma.done %s169, 64
        $region36: #{tpu_custom_call.1} parent=27 // pred_fallthru
          _
        %s177 = sand.u32 %s30, 1
        %s178 = scalar_lea.sflag [#allocation3], %s177
        %s179 = sand.u32 %s30, 1
        %s180 = smul.addr %s179, 32
        %s181 = scalar_lea.vmem [#allocation2], %s180
        %p182 = pneg %p43
        %p183 = pneg %p40
        %s184 = sand.u32 %s56, 1
        %s185 = scalar_lea.sflag [#allocation6], %s184
        %s186 = sand.u32 %s56, 1
        %s187 = smul.addr %s186, 4
        %s188 = scalar_lea.vmem [#allocation5], %s187
        %p189 = pneg %p69
        %p190 = pneg %p66
        %p191 = pneg %p95
        %p192 = pneg %p92
        %s193 = sand.u32 %s82, 1
        %s194 = scalar_lea.sflag [#allocation4], %s193
        %s195 = sand.u32 %s82, 1
        %s196 = smul.addr %s195, 4
        %s197 = scalar_lea.vmem [#allocation7], %s196
        %s198 = smul.u32 4, %s22
        %s199 = smul.u32 4, %s22
        %s200 = smul.u32 4, %s22
        %v201 = vld [vmem:[%s163] sm:$0x7f]
        %v202 = vld [vmem:[%s163 + $0x8] sm:$0x7f]
        %v203 = vld [vmem:[%s163 + $0x10] sm:$0x7f]
        %v204 = vld [vmem:[%s163 + $0x18] sm:$0x7f]
        %v205 = vmul.f32 %v201, %v201
        %v206 = vmul.f32 %v202, %v202
        %v207 = vmul.f32 %v203, %v203
        %v208 = vmul.f32 %v204, %v204
        %vm209 = vcmp.ge.f32.partialorder %v205, 1e-06
        %vm210 = vcmp.ge.f32.partialorder %v206, 1e-06
        %vm211 = vcmp.ge.f32.partialorder %v207, 1e-06
        %vm212 = vcmp.ge.f32.partialorder %v208, 1e-06
        %v213 = vsel %vm209, %v205, 0.0
        %v214 = vsel %vm210, %v206, 0.0
        %v215 = vsel %vm211, %v207, 0.0
        %v216 = vsel %vm212, %v208, 0.0
        %vm217 = vcmask 1046528
        %v218 = vsel %vm217, %v213, 0.0
        %v219 = vrot.slane %v218, 4
        %v220 = vadd.f32 %v218, %v219
        %v221 = vrot.slane %v220, 2
        %v222 = vadd.f32 %v220, %v221
        %v223 = vrot.slane %v222, 1
        %v224 = vadd.f32 %v222, %v223
        %v225 = vsel %vm217, %v214, 0.0
        %v226 = vrot.slane %v225, 4
        %v227 = vadd.f32 %v225, %v226
        %v228 = vrot.slane %v227, 2
        %v229 = vadd.f32 %v227, %v228
        %v230 = vrot.slane %v229, 1
        %v231 = vadd.f32 %v229, %v230
        %v232 = vsel %vm217, %v215, 0.0
        %v233 = vrot.slane %v232, 4
        %v234 = vadd.f32 %v232, %v233
        %v235 = vrot.slane %v234, 2
        %v236 = vadd.f32 %v234, %v235
        %v237 = vrot.slane %v236, 1
        %v238 = vadd.f32 %v236, %v237
        %v239 = vsel %vm217, %v216, 0.0
        %v240 = vrot.slane %v239, 4
        %v241 = vadd.f32 %v239, %v240
        %v242 = vrot.slane %v241, 2
        %v243 = vadd.f32 %v241, %v242
        %v244 = vrot.slane %v243, 1
        %v245 = vadd.f32 %v243, %v244
        %v246 = vld [vmem:[%s172] sm:$0xf]
        %vm247 = vcmp.le.f32.partialorder %v246, 100.0
        %v252 = vcombine.low %v224, %v231
        %v253 = vcombine.low %v238, %v245
        %v255 = vunpack.c.l.s4 1966171168
        %v256 = vunpack.c.0.s8 %v255
        %v257 = vlaneseq
        %v258 = vshrl.u32 %v257, 7
        %v259 = vsub.s32 %v256, %v258
        %v260 = vrot.slane %v252, %v259
        %v262 = vunpack.c.l.s4 1966171168
        %v263 = vunpack.c.0.s8 %v262
        %v264 = vlaneseq
        %v265 = vshrl.u32 %v264, 7
        %v266 = vsub.s32 %v263, %v265
        %v267 = vrot.slane %v253, %v266
        %v268 = vcombine.low %v260, %v267
        %v270 = vunpack.c.l.s4 1966171168
        %v271 = vunpack.c.0.s8 %v270
        %v272 = vlaneseq
        %v273 = vshrl.u32 %v272, 7
        %v274 = vsub.s32 %v271, %v273
        %v275 = vrot.slane %v268, %v274
        %v277 = vsel %vm247, %v275, 0.0
        %v278 = vlaneseq
        %vm279 = vcmp.ge.s32.totalorder %v278, 0
        %vm280 = vcmp.lt.s32.totalorder %v278, 512
        %vm281 = vmand %vm279, %vm280
        %282 = vst.msk [vmem:[%s197] sm:$0xf] %vm281, %v277
        %s283 = sand.u32 %s82, 1
        %s284 = scalar_lea.sflag [#allocation4], %s283
        %s285 = sand.u32 %s82, 1
        %s286 = smul.addr %s285, 4
        %s287 = scalar_lea.vmem [#allocation7], %s286
        // Predicated region
        $region37: #{tpu_custom_call.1} parent=27 // pred_check
          %p288 = pneg %p92
        $region38: #{tpu_custom_call.1} parent=27 // pred_check_branch
          %290 = sbr.rel (%p288) target = $region40
        $region39: #{tpu_custom_call.1} parent=27 // pred_region
          %s291 = smul.u32 4, %s22
          %s293 = ssub.s32 64, 64
          %294 = vsyncadd %s284, %s293
          %s295 = smul.addr %s291, 16
          %s296 = scalar_lea.hbm %s2, %s295
          %s298 = sshll.u32 %s287, 4
          %s299 = int_to_ptr.vmem [resolvable:$true] %s298
          %301 = dma.vmem_to_hbm [thread:$0]  %s299, 64, %s296, %s284
        $region40: #{tpu_custom_call.1} parent=27 // pred_fallthru
          _
      $region28: #{tpu_custom_call.1} parent=5 // pred_fallthru
        _
      %p302 = scmp.le.s32.totalorder 2, %s17
      // Predicated region
      $region41: #{tpu_custom_call.1} parent=5 // pred_check
        %p303 = pneg %p302
      $region42: #{tpu_custom_call.1} parent=5 // pred_check_branch
        %305 = sbr.rel (%p303) target = $region44
      $region43: #{tpu_custom_call.1} parent=5 // pred_region
        %s306 = ssub.s32 %s17, 2
        // Predicated region
        $region45: #{tpu_custom_call.1} parent=43 // pred_check
          %p307 = pneg %p98
        $region46: #{tpu_custom_call.1} parent=43 // pred_check_branch
          %309 = sbr.rel (%p307) target = $region48
        $region47: #{tpu_custom_call.1} parent=43 // pred_region
          %s310 = sand.u32 %s83, 1
          %s311 = scalar_lea.sflag [#allocation4], %s310
          %s312 = sand.u32 %s83, 1
          %s313 = smul.addr %s312, 4
          %s314 = scalar_lea.vmem [#allocation7], %s313
          %315 = dma.done %s311, 64
        $region48: #{tpu_custom_call.1} parent=43 // pred_fallthru
          _
      $region44: #{tpu_custom_call.1} parent=5 // pred_fallthru
        _
    $region6: #{tpu_custom_call.1} parent=1 // loop_footer
      %s21 = sadd.s32 1, %s17
    $region7: #{tpu_custom_call.1} parent=1 // loop_footer_branch
      %16 = sbr.rel target = $region3
    $region8: #{tpu_custom_call.1} parent=1 // loop_exit
      _
    %316 = vsyncpa [#allocation3], 1
    %s317 = scalar_lea.sflag [#allocation3], 1
    %318 = vsyncpa %s317, 1
    %319 = vsyncpa [#allocation6], 1
    %s320 = scalar_lea.sflag [#allocation6], 1
    %321 = vsyncpa %s320, 1
    %322 = vsyncpa [#allocation4], 1
    %s323 = scalar_lea.sflag [#allocation4], 1
    %324 = vsyncpa %s323, 1

</llo_original>
